<compile_context>
chip_gen: v7x
topology: tpu7x:2x2x1
jax: 0.10.0
libtpu: 0.0.40
codegen_flags: <defaults>
</compile_context>

<pallas_src>
import functools

import jax
import jax.numpy as jnp
from jax.experimental import pallas as pl
from jax.experimental.pallas import tpu as pltpu

# Conservative, generation-portable VMEM sizing (v7x has only 64 MiB physical per TC).
_VMEM_TILE_BUDGET_BYTES = 36 * 1024 * 1024   # budget used to derive tile_n
_VMEM_LIMIT_BYTES = 48 * 1024 * 1024         # explicit scoped-VMEM limit for the kernel
_MAX_TILE_N = 16384


def _round_up(x: int, m: int) -> int:
    return (x + m - 1) // m * m


def _powered_factor(p, one_minus_p, alpha: float):
    """(1 - p)^alpha * p, specialized for the common alpha values."""
    a = float(alpha)
    if a == 1.0:
        return one_minus_p * p
    if a.is_integer() and 0.0 <= a <= 4.0:
        w = jnp.ones_like(p)
        for _ in range(int(a)):
            w = w * one_minus_p
        return w * p
    return jnp.power(one_minus_p, a) * p


def _dice_kernel(logits_ref, tgt_ref, out_ref, *,
                 alpha: float, gamma: float, reduction: str,
                 total_n: int, tile_n: int):
    # ---- hot path: stable softmax-gather (never materializes full probs) ----
    x = logits_ref[...].astype(jnp.float32)                        # (TN, C)
    m = jnp.max(x, axis=-1, keepdims=True)
    e = jnp.exp(x - m)                                             # (TN, C)
    sum_e = jnp.sum(e, axis=-1, keepdims=True)                     # (TN, 1)

    tgt = tgt_ref[...]                                             # (TN, 1) int32
    col = jax.lax.broadcasted_iota(jnp.int32, e.shape, 1)          # (TN, C)
    e_tgt = jnp.sum(jnp.where(col == tgt, e, 0.0),
                    axis=-1, keepdims=True)                        # (TN, 1)
    p = e_tgt * pl.reciprocal(sum_e, approx=False)                 # gathered softmax prob

    pf = _powered_factor(p, 1.0 - p, alpha)                        # (1-p)^alpha * p
    loss = 1.0 - (2.0 * pf + gamma) / (pf + 1.0 + gamma)           # (TN, 1)

    if reduction == "none":
        # Padded tail rows (if any) are written but sliced off in the wrapper.
        # (Lane-dense output transpose would help further when C is tiny; output BW is ~1/C
        #  of input BW here, so it is a secondary optimization.)
        out_ref[...] = loss
    else:
        # Per-tile partial sum -> no carried state -> grid axis can be 'parallel'.
        rows = (pl.program_id(0) * tile_n
                + jax.lax.broadcasted_iota(jnp.int32, loss.shape, 0))
        valid = rows < total_n
        out_ref[...] = jnp.sum(jnp.where(valid, loss, 0.0)).reshape(1, 1)


def self_adj_dice_loss(logits: jax.Array, targets: jax.Array, *,
                       alpha: float = 1.0, gamma: float = 1.0,
                       reduction: str = "mean", tile_n: int | None = None) -> jax.Array:
    """Pallas TPU implementation of SelfAdjDiceLoss.forward.

    logits: (N, C) float; targets: (N,) int in [0, C-1].
    Returns a scalar for 'mean'/'sum', or an (N, 1) array for 'none' (matching PyTorch).
    """
    if reduction not in ("mean", "sum", "none", None):
        raise NotImplementedError(f"Reduction `{reduction}` is not supported.")
    reduction = "none" if reduction is None else reduction

    N, C = logits.shape

    if tile_n is None:
        in_itemsize = jnp.dtype(logits.dtype).itemsize
        # 2 double-buffered input copies + ~2 f32-sized (TN, C) temporaries per row.
        bytes_per_row = max(C * (2 * in_itemsize + 2 * 4), 1)
        tile_n = _VMEM_TILE_BUDGET_BYTES // bytes_per_row
        tile_n = min(tile_n, _MAX_TILE_N)
    tile_n = min(int(tile_n), _round_up(N, 8))
    tile_n = max(8, (tile_n // 8) * 8)
    # TODO(synk): for vocab-scale C where even 8 rows x C won't fit VMEM, add a second
    # grid axis over C with an online-softmax (running max / sum / gathered e_tgt).

    n_pad = _round_up(N, tile_n)
    if n_pad != N:
        logits = jnp.pad(logits, ((0, n_pad - N), (0, 0)))
        targets = jnp.pad(targets, (0, n_pad - N))
    tgt2d = targets.astype(jnp.int32).reshape(n_pad, 1)

    num_tiles = n_pad // tile_n
    grid = (num_tiles,)

    if reduction == "none":
        out_shape = jax.ShapeDtypeStruct((n_pad, 1), jnp.float32)
        out_spec = pl.BlockSpec((tile_n, 1), lambda i: (i, 0))
    else:
        # Per-tile partial sums; final reduction happens in the wrapper.
        out_shape = jax.ShapeDtypeStruct((num_tiles, 1), jnp.float32)
        out_spec = pl.BlockSpec((1, 1), lambda i: (i, 0))

    kernel = functools.partial(_dice_kernel, alpha=alpha, gamma=gamma,
                               reduction=reduction, total_n=N, tile_n=tile_n)

    out = pl.pallas_call(
        kernel,
        out_shape=out_shape,
        grid_spec=pltpu.PrefetchScalarGridSpec(
            num_scalar_prefetch=0,
            grid=grid,
            in_specs=[
                pl.BlockSpec((tile_n, C), lambda i: (i, 0)),   # logits tile
                pl.BlockSpec((tile_n, 1), lambda i: (i, 0)),   # targets tile
            ],
            out_specs=out_spec,
        ),
        compiler_params=pltpu.CompilerParams(
            dimension_semantics=("parallel",),                  # no cross-tile state
            vmem_limit_bytes=_VMEM_LIMIT_BYTES,
        ),
    )(logits, tgt2d)

    if reduction == "none":
        return out[:N].astype(logits.dtype)                     # (N, 1), like PyTorch
    total = jnp.sum(out)
    if reduction == "mean":
        total = total / jnp.float32(N)
    return total.astype(logits.dtype)


def _reference(logits, targets, alpha=1.0, gamma=1.0, reduction="mean"):
    probs = jax.nn.softmax(logits.astype(jnp.float32), axis=1)
    p = jnp.take_along_axis(probs, targets[:, None].astype(jnp.int32), axis=1)
    pf = (1.0 - p) ** alpha * p
    loss = 1.0 - (2.0 * pf + gamma) / (pf + 1.0 + gamma)
    if reduction == "mean":
        return loss.mean()
    if reduction == "sum":
        return loss.sum()
    return loss                                                  # (N, 1)


if __name__ == "__main__":
    key = jax.random.PRNGKey(0)
    k1, k2, k3, k4 = jax.random.split(key, 4)

    # Small shapes consistent with the module: N samples x C classes.
    N, C = 16, 32
    logits = jax.random.normal(k1, (N, C), dtype=jnp.float32)
    targets = jax.random.randint(k2, (N,), 0, C, dtype=jnp.int32)

    out_mean = jax.block_until_ready(self_adj_dice_loss(logits, targets, reduction="mean"))
    out_sum = jax.block_until_ready(self_adj_dice_loss(logits, targets, reduction="sum"))
    out_none = jax.block_until_ready(self_adj_dice_loss(logits, targets, reduction="none"))

    assert jnp.allclose(out_mean, _reference(logits, targets, reduction="mean"), atol=1e-5)
    assert jnp.allclose(out_sum, _reference(logits, targets, reduction="sum"), atol=1e-5)
    assert jnp.allclose(out_none, _reference(logits, targets, reduction="none"), atol=1e-5)

    # Ragged N (exercises padding + in-kernel tail masking) with a forced small tile.
    N2 = 13
    logits2 = jax.random.normal(k3, (N2, C), dtype=jnp.float32)
    targets2 = jax.random.randint(k4, (N2,), 0, C, dtype=jnp.int32)
    o_m = jax.block_until_ready(
        self_adj_dice_loss(logits2, targets2, alpha=2.0, gamma=0.5, reduction="mean", tile_n=8))
    o_n = jax.block_until_ready(
        self_adj_dice_loss(logits2, targets2, alpha=2.0, gamma=0.5, reduction="none", tile_n=8))
    assert jnp.allclose(o_m, _reference(logits2, targets2, 2.0, 0.5, "mean"), atol=1e-5)
    assert jnp.allclose(o_n, _reference(logits2, targets2, 2.0, 0.5, "none"), atol=1e-5)

    print("KERNEL_OK")
</pallas_src>

<mosaic_0001>
module attributes {stable_mosaic.version = 11 : i64} {
  func.func @_dice_kernel(%arg0: i32, %arg1: memref<16x32xf32, #tpu.memory_space<vmem>>, %arg2: memref<16x1xi32, #tpu.memory_space<vmem>>, %arg3: memref<1x1xf32, #tpu.memory_space<vmem>>) attributes {dimension_semantics = [#tpu.dimension_semantics<parallel>], iteration_bounds = array<i64: 1>, scalar_prefetch = 0 : i64, scratch_operands = 0 : i64, tpu.core_type = #tpu.core_type<tc>, window_params = [{transform_indices = @transform_0, window_bounds = array<i64: 16, 32>}, {transform_indices = @transform_1, window_bounds = array<i64: 16, 1>}, {transform_indices = @transform_2, window_bounds = array<i64: 1, 1>}]} {
    %c0 = arith.constant 0 : index
    %c0_0 = arith.constant 0 : index
    %0 = vector.load %arg1[%c0, %c0_0] : memref<16x32xf32, #tpu.memory_space<vmem>>, vector<16x32xf32>
    %cst = arith.constant dense<0xFF800000> : vector<16xf32>
    %1 = vector.multi_reduction <maximumf>, %0, %cst [1] : vector<16x32xf32> to vector<16xf32>
    %2 = vector.shape_cast %1 : vector<16xf32> to vector<16x1xf32>
    %3 = vector.broadcast %2 : vector<16x1xf32> to vector<16x32xf32>
    %4 = arith.subf %0, %3 : vector<16x32xf32>
    %5 = math.exp %4 : vector<16x32xf32>
    %cst_1 = arith.constant dense<0.000000e+00> : vector<16xf32>
    %6 = vector.multi_reduction <add>, %5, %cst_1 [1] : vector<16x32xf32> to vector<16xf32>
    %7 = vector.shape_cast %6 : vector<16xf32> to vector<16x1xf32>
    %c0_2 = arith.constant 0 : index
    %c0_3 = arith.constant 0 : index
    %8 = vector.load %arg2[%c0_2, %c0_3] : memref<16x1xi32, #tpu.memory_space<vmem>>, vector<16x1xi32>
    %9 = tpu.iota {dimensions = array<i32: 1>} : vector<16x32xi32>
    %10 = vector.broadcast %8 : vector<16x1xi32> to vector<16x32xi32>
    %11 = arith.cmpi eq, %9, %10 : vector<16x32xi32>
    %cst_4 = arith.constant 0.000000e+00 : f32
    %12 = vector.broadcast %cst_4 : f32 to vector<16x32xf32>
    %13 = arith.select %11, %5, %12 : vector<16x32xi1>, vector<16x32xf32>
    %cst_5 = arith.constant dense<0.000000e+00> : vector<16xf32>
    %14 = vector.multi_reduction <add>, %13, %cst_5 [1] : vector<16x32xf32> to vector<16xf32>
    %15 = vector.shape_cast %14 : vector<16xf32> to vector<16x1xf32>
    %16 = tpu.reciprocal %7 : vector<16x1xf32> -> vector<16x1xf32>
    %17 = arith.mulf %15, %16 : vector<16x1xf32>
    %cst_6 = arith.constant 1.000000e+00 : f32
    %18 = vector.broadcast %cst_6 : f32 to vector<16x1xf32>
    %19 = arith.subf %18, %17 : vector<16x1xf32>
    %20 = arith.mulf %19, %17 : vector<16x1xf32>
    %cst_7 = arith.constant 2.000000e+00 : f32
    %21 = vector.broadcast %cst_7 : f32 to vector<16x1xf32>
    %22 = arith.mulf %21, %20 : vector<16x1xf32>
    %cst_8 = arith.constant 1.000000e+00 : f32
    %23 = vector.broadcast %cst_8 : f32 to vector<16x1xf32>
    %24 = arith.addf %22, %23 : vector<16x1xf32>
    %cst_9 = arith.constant 1.000000e+00 : f32
    %25 = vector.broadcast %cst_9 : f32 to vector<16x1xf32>
    %26 = arith.addf %20, %25 : vector<16x1xf32>
    %cst_10 = arith.constant 1.000000e+00 : f32
    %27 = vector.broadcast %cst_10 : f32 to vector<16x1xf32>
    %28 = arith.addf %26, %27 : vector<16x1xf32>
    %29 = arith.divf %24, %28 : vector<16x1xf32>
    %cst_11 = arith.constant 1.000000e+00 : f32
    %30 = vector.broadcast %cst_11 : f32 to vector<16x1xf32>
    %31 = arith.subf %30, %29 : vector<16x1xf32>
    %c16_i32 = arith.constant 16 : i32
    %32 = arith.muli %arg0, %c16_i32 : i32
    %33 = tpu.iota {dimensions = array<i32: 0>} : vector<16x1xi32>
    %34 = vector.broadcast %32 : i32 to vector<16x1xi32>
    %35 = arith.addi %34, %33 : vector<16x1xi32>
    %c16_i32_12 = arith.constant 16 : i32
    %36 = vector.broadcast %c16_i32_12 : i32 to vector<16x1xi32>
    %37 = arith.cmpi slt, %35, %36 : vector<16x1xi32>
    %cst_13 = arith.constant 0.000000e+00 : f32
    %38 = vector.broadcast %cst_13 : f32 to vector<16x1xf32>
    %39 = arith.select %37, %31, %38 : vector<16x1xi1>, vector<16x1xf32>
    %40 = vector.shape_cast %39 : vector<16x1xf32> to vector<1x16x1xf32>
    %cst_14 = arith.constant dense<0.000000e+00> : vector<1xf32>
    %41 = vector.multi_reduction <add>, %40, %cst_14 [1, 2] : vector<1x16x1xf32> to vector<1xf32>
    %42 = vector.shape_cast %41 : vector<1xf32> to vector<1x1x1xf32>
    %43 = vector.extract %42[0, 0, 0] : f32 from vector<1x1x1xf32>
    %44 = vector.broadcast %43 : f32 to vector<1x1xf32>
    %c0_15 = arith.constant 0 : index
    %c0_16 = arith.constant 0 : index
    %45 = vector.load %arg3[%c0_15, %c0_16] : memref<1x1xf32, #tpu.memory_space<vmem>>, vector<1x1xf32>
    tpu.vector_store %arg3[%c0_15, %c0_16], %44 {strides = array<i32>} : memref<1x1xf32, #tpu.memory_space<vmem>>, vector<1x1xf32>,
    return
  }
  func.func @transform_0(%arg0: i32) -> (i32, i32) {
    %c0_i32 = arith.constant 0 : i32
    %c0_i32_0 = arith.constant 0 : i32
    return %arg0, %c0_i32 : i32, i32
  }
  func.func @transform_1(%arg0: i32) -> (i32, i32) {
    %c0_i32 = arith.constant 0 : i32
    %c0_i32_0 = arith.constant 0 : i32
    return %arg0, %c0_i32 : i32, i32
  }
  func.func @transform_2(%arg0: i32) -> (i32, i32) {
    %c0_i32 = arith.constant 0 : i32
    %c0_i32_0 = arith.constant 0 : i32
    return %arg0, %c0_i32 : i32, i32
  }
}

</mosaic_0001>

<llo_original>
// kernel: tpu_custom_call.1
$region0: #{tpu_custom_call.1}
  #allocation0 [shape = 'u32[]', space=smem, size = 0x4, offset = 0x4, fixed_abs, tag = 'smem constant byte address 0x4 - core index']
  #allocation1 [shape = 'u32[144,128]{1,0:T(1,128)}', space=vmem, size = 0x12000, scoped, tag = 'internal scratch']
  %s0 = inlined_call_operand.vmem [shape: f32[16,32], index: 0, kind: input, shape index: {}]
  %s1 = inlined_call_operand.vmem [shape: s32[16,1], index: 1, kind: input, shape index: {}]
  %s2 = inlined_call_operand.hbm [shape: f32[1,1], index: 2, kind: output, shape index: {}]
  %s3 = sld [smem:[#allocation0]]
  $region18: #{tpu_custom_call.1} parent=0
    _
  %s5 = ssub.s32 1, %s3
  %s6 = scalar_select 0, %s5, %s3
  $region1: #{tpu_custom_call.1} parent=0
    #allocation2 [shape = 'u8[512]{0}', space=vmem, size = 0x400, scoped, tag = 'output window, operand 0, single buffered']
    #allocation3 [shape = 's32[1]{0}', space=sflag, size = 0x4, scoped, tag = 'scoped memory for tpu_custom_call.1']
    %7 = vsyncpa [#allocation3], 0
    // Predicated region
    $region2: #{tpu_custom_call.1} parent=1 // pred_check
      _
    $region3: #{tpu_custom_call.1} parent=1 // pred_check_branch
      %9 = sbr.rel (0) target = $region5
    $region4: #{tpu_custom_call.1} parent=1 // pred_region
      _
    $region5: #{tpu_custom_call.1} parent=1 // pred_fallthru
      _
    // Predicated region
    $region6: #{tpu_custom_call.1} parent=1 // pred_check
      _
    $region7: #{tpu_custom_call.1} parent=1 // pred_check_branch
      %11 = sbr.rel (0) target = $region9
    $region8: #{tpu_custom_call.1} parent=1 // pred_region
      _
    $region9: #{tpu_custom_call.1} parent=1 // pred_fallthru
      _
    %v12 = vld [vmem:[%s0] sm:$0xff]
    %v13 = vld [vmem:[%s0 + $0x8] sm:$0xff]
    %vm14 = vcmask 261120
    %v15 = vsel %vm14, %v12, -inf
    %16 = vmax.xlane.f32.xlu0 %v15
    %v17 = vpop.xlane.xlu0 %16
    %v18 = vsel %vm14, %v13, -inf
    %19 = vmax.xlane.f32.xlu0 %v18
    %v20 = vpop.xlane.xlu0 %19
    %v21 = vsub.f32 %v12, %v17
    %v22 = vsub.f32 %v13, %v20
    %v23 = vmul.f32 %v21, 1.442695
    %v24 = vpow.pop %v23
    %v25 = vmul.f32 %v22, 1.442695
    %v26 = vpow.pop %v25
    %v27 = vsel %vm14, %v24, 0.0
    %28 = vadd.xlane.f32.xlu0 %v27
    %v29 = vpop.xlane.xlu0 %28
    %v30 = vsel %vm14, %v26, 0.0
    %31 = vadd.xlane.f32.xlu0 %v30
    %v32 = vpop.xlane.xlu0 %31
    %v33 = vld [vmem:[%s1] sm:$0xff]
    %v34 = vld [vmem:[%s1 + $0x8] sm:$0xff]
    %v35 = vlaneseq
    %v36 = vand.u32 %v35, 127
    %37 = vset.pattern.permute.xlu0 0
    %38 = vperm.xlu0 %37, %v33
    %v39 = vpop.permute.xlu0 %38
    %40 = vset.pattern.permute.xlu0 0
    %41 = vperm.xlu0 %40, %v34
    %v42 = vpop.permute.xlu0 %41
    %vm43 = vcmp.eq.s32.totalorder %v36, %v39
    %vm44 = vcmp.eq.s32.totalorder %v36, %v42
    %v45 = vsel %vm43, %v24, 0.0
    %v46 = vsel %vm44, %v26, 0.0
    %v47 = vsel %vm14, %v45, 0.0
    %48 = vadd.xlane.f32.xlu0 %v47
    %v49 = vpop.xlane.xlu0 %48
    %v50 = vsel %vm14, %v46, 0.0
    %51 = vadd.xlane.f32.xlu0 %v50
    %v52 = vpop.xlane.xlu0 %51
    %v53 = vrcp.pop %v29
    %v54 = vrcp.pop %v32
    %v55 = vmul.f32 %v49, %v53
    %v56 = vmul.f32 %v52, %v54
    %v57 = vsub.f32 1.0, %v55
    %v58 = vsub.f32 1.0, %v56
    %v59 = vmul.f32 %v57, %v55
    %v60 = vmul.f32 %v58, %v56
    %v61 = vmul.f32 %v59, 2.0
    %v62 = vmul.f32 %v60, 2.0
    %v63 = vadd.f32 %v61, 1.0
    %v64 = vadd.f32 %v62, 1.0
    %v65 = vadd.f32 %v59, 1.0
    %v66 = vadd.f32 %v60, 1.0
    %v67 = vadd.f32 %v65, 1.0
    %v68 = vadd.f32 %v66, 1.0
    %v69 = vrcp.pop %v67
    %v70 = vmul.f32 %v63, %v69
    %v71 = vrcp.pop %v68
    %v72 = vmul.f32 %v64, %v71
    %v73 = vsub.f32 1.0, %v70
    %v74 = vsub.f32 1.0, %v72
    %s75 = smul.u32 0, 16
    %v76 = vlaneseq
    %v77 = vshrl.u32 %v76, 7
    %v78 = vadd.s32 %v77, 8
    %v79 = vstv %s75
    %v80 = vadd.s32 %v79, %v77
    %v81 = vadd.s32 %v79, %v78
    %vm82 = vcmp.lt.s32.totalorder %v80, 16
    %vm83 = vcmp.lt.s32.totalorder %v81, 16
    %v84 = vsel %vm82, %v73, 0.0
    %v85 = vsel %vm83, %v74, 0.0
    %vm86 = vcmask 7168
    %v87 = vsel %vm86, %v84, 0.0
    %v88 = vsel %vm86, %v85, 0.0
    %v89 = vadd.f32 %v87, %v88
    %90 = vadd.xlane.f32.xlu0 %v89
    %v91 = vpop.xlane.xlu0 %90
    %v92 = vrot.slane %v91, 4
    %v93 = vadd.f32 %v91, %v92
    %v94 = vrot.slane %v93, 2
    %v95 = vadd.f32 %v93, %v94
    %v96 = vrot.slane %v95, 1
    %v97 = vadd.f32 %v95, %v96
    %s98 = vtos %v97
    %v99 = vstv %s98
    %vm100 = vcmask 0
    %101 = vst.msk [vmem:[#allocation2] sm:$0x1] %vm100, %v99
    // Predicated region
    $region10: #{tpu_custom_call.1} parent=1 // pred_check
      _
    $region11: #{tpu_custom_call.1} parent=1 // pred_check_branch
      %103 = sbr.rel (0) target = $region13
    $region12: #{tpu_custom_call.1} parent=1 // pred_region
      %s105 = ssub.s32 16, 16
      %106 = vsyncadd [#allocation3], %s105
      %s108 = sshll.u32 [#allocation2], 4
      %s109 = int_to_ptr.vmem [resolvable:$true] %s108
      %111 = dma.vmem_to_hbm [thread:$0]  %s109, 16, %s2, [#allocation3]
    $region13: #{tpu_custom_call.1} parent=1 // pred_fallthru
      _
    // Predicated region
    $region14: #{tpu_custom_call.1} parent=1 // pred_check
      _
    $region15: #{tpu_custom_call.1} parent=1 // pred_check_branch
      %113 = sbr.rel (0) target = $region17
    $region16: #{tpu_custom_call.1} parent=1 // pred_region
      %114 = dma.done [#allocation3], 16
    $region17: #{tpu_custom_call.1} parent=1 // pred_fallthru
      _
    %115 = vsyncpa [#allocation3], 1

</llo_original>
